<compile_context>
chip_gen: v5e
topology: v5e:2x2
jax: 0.10.0
libtpu: 0.0.40
codegen_flags: <defaults>
</compile_context>

<pallas_src>
import math

import jax
import jax.numpy as jnp
from jax import lax
from jax.experimental import pallas as pl
from jax.experimental.pallas import tpu as pltpu


# ----------------------------------------------------------------------------
# small helpers
# ----------------------------------------------------------------------------

def _row_tile(m, target=512):
    """Largest row tile <= target that divides m (power-of-two steps down to 8)."""
    if m <= target or m % 8 != 0:
        return m
    t = target
    while t >= 8:
        if m % t == 0:
            return t
        t //= 2
    return m


def _scan_chunk(L):
    """Pick (chunk T, padded length Lp) for the selective scan.
    T is a multiple of 8 (or == Lp) so blocks stay (8,128)-legal; L is padded to a
    multiple of T so we never fall back to fully unrolling a huge sequence."""
    Lp = ((L + 7) // 8) * 8
    if Lp <= 64:
        return Lp, Lp
    best = None
    for t in range(64, 23, -8):                 # prefer minimal padding, then larger T
        pad = (-L) % t
        key = (pad, -t)
        if best is None or key < best[0]:
            best = (key, t)
    T = best[1]
    Lp = ((L + T - 1) // T) * T
    return T, Lp


def _rot(x, token_size):
    b, m, c = x.shape
    H, W = token_size
    return x.reshape(b, H, W, c).transpose(0, 2, 1, 3).reshape(b, m, c)


def _unrot(x, token_size):
    b, m, c = x.shape
    H, W = token_size
    return x.reshape(b, W, H, c).transpose(0, 2, 1, 3).reshape(b, m, c)


# ----------------------------------------------------------------------------
# Pallas kernels
# ----------------------------------------------------------------------------

def _linear_bias_kernel(x_ref, w_ref, b_ref, o_ref):
    y = jnp.dot(x_ref[...], w_ref[...], preferred_element_type=jnp.float32)
    o_ref[...] = (y + b_ref[...]).astype(o_ref.dtype)


def _linear_kernel(x_ref, w_ref, o_ref):
    y = jnp.dot(x_ref[...], w_ref[...], preferred_element_type=jnp.float32)
    o_ref[...] = y.astype(o_ref.dtype)


def linear(x2d, w_t, b=None):
    """nn.Linear with pre-transposed weight: x2d (M,K) bf16, w_t (K,N) bf16 -> (M,N) bf16."""
    m, k = x2d.shape
    n = w_t.shape[1]
    tm = _row_tile(m)
    in_specs = [pl.BlockSpec((tm, k), lambda i: (i, 0)),
                pl.BlockSpec((k, n), lambda i: (0, 0))]
    args = [x2d, w_t]
    kern = _linear_kernel
    if b is not None:
        in_specs.append(pl.BlockSpec((1, n), lambda i: (0, 0)))
        args.append(b.reshape(1, n))
        kern = _linear_bias_kernel
    return pl.pallas_call(
        kern,
        out_shape=jax.ShapeDtypeStruct((m, n), jnp.bfloat16),
        grid_spec=pltpu.PrefetchScalarGridSpec(
            num_scalar_prefetch=0, grid=(m // tm,),
            in_specs=in_specs,
            out_specs=pl.BlockSpec((tm, n), lambda i: (i, 0))),
        compiler_params=pltpu.CompilerParams(dimension_semantics=("parallel",)),
    )(*args)


def _make_add_norm_inproj_kernel(eps):
    def kernel(h_ref, r_ref, nw_ref, wx_ref, wz_ref, res_ref, x_ref, z_ref):
        # residual add (f32) + RMSNorm (f32) + two MXU matmuls (bf16, f32 acc)
        res = h_ref[...].astype(jnp.float32) + r_ref[...]
        res_ref[...] = res
        ms = jnp.mean(res * res, axis=-1, keepdims=True)
        normed = (res * lax.rsqrt(ms + eps) * nw_ref[...]).astype(wx_ref.dtype)
        x_ref[...] = jnp.dot(normed, wx_ref[...],
                             preferred_element_type=jnp.float32).astype(x_ref.dtype)
        z_ref[...] = jnp.dot(normed, wz_ref[...],
                             preferred_element_type=jnp.float32).astype(z_ref.dtype)
    return kernel


def add_norm_inproj(h2d, r2d, norm_w, wx, wz, eps=1e-5):
    """residual = r + h ; normed = RMSNorm(residual) ; x = normed@Wx ; z = normed@Wz."""
    m, d = h2d.shape
    di = wx.shape[1]
    tm = _row_tile(m)
    return pl.pallas_call(
        _make_add_norm_inproj_kernel(eps),
        out_shape=(jax.ShapeDtypeStruct((m, d), jnp.float32),     # residual stream
                   jax.ShapeDtypeStruct((m, di), jnp.bfloat16),   # x branch
                   jax.ShapeDtypeStruct((m, di), jnp.bfloat16)),  # z (gate) branch
        grid_spec=pltpu.PrefetchScalarGridSpec(
            num_scalar_prefetch=0, grid=(m // tm,),
            in_specs=[pl.BlockSpec((tm, d), lambda i: (i, 0)),
                      pl.BlockSpec((tm, d), lambda i: (i, 0)),
                      pl.BlockSpec((1, d), lambda i: (0, 0)),
                      pl.BlockSpec((d, di), lambda i: (0, 0)),
                      pl.BlockSpec((d, di), lambda i: (0, 0))],
            out_specs=(pl.BlockSpec((tm, d), lambda i: (i, 0)),
                       pl.BlockSpec((tm, di), lambda i: (i, 0)),
                       pl.BlockSpec((tm, di), lambda i: (i, 0)))),
        compiler_params=pltpu.CompilerParams(dimension_semantics=("parallel",)),
    )(h2d, r2d, norm_w.reshape(1, d), wx, wz)


def _conv_silu_kernel(x_ref, w_ref, b_ref, o_ref, xp_ref):
    # x_ref: (1, L, td); w_ref: (K, td); b_ref: (1, td); xp_ref: (L+K-1, td) scratch.
    K = w_ref.shape[0]
    L = x_ref.shape[1]
    # causal left-pad lives in VMEM scratch (no extra HBM round trip)
    xp_ref[pl.ds(0, K - 1), :] = jnp.zeros((K - 1, xp_ref.shape[1]), xp_ref.dtype)
    xp_ref[pl.ds(K - 1, L), :] = x_ref[0].astype(xp_ref.dtype)
    w = w_ref[...].astype(jnp.float32)
    acc = jnp.broadcast_to(b_ref[...], (L, b_ref.shape[1])).astype(jnp.float32)
    for j in range(K):
        acc = acc + w[j:j + 1, :] * xp_ref[pl.ds(j, L), :]
    acc = acc * jax.nn.sigmoid(acc)                               # fused SiLU
    o_ref[0] = acc.astype(o_ref.dtype)


def conv_silu(x, w_t, b):
    """Causal depthwise conv1d over tokens + fused SiLU.
    x: (B, L, D) bf16, w_t: (K, D) bf16 (taps on sublanes), b: (D,) f32."""
    bsz, L, din = x.shape
    K = w_t.shape[0]
    td = 128 if din % 128 == 0 else din          # lane-dense channel tiles
    nd = din // td
    return pl.pallas_call(
        _conv_silu_kernel,
        out_shape=jax.ShapeDtypeStruct((bsz, L, din), jnp.bfloat16),
        grid_spec=pltpu.PrefetchScalarGridSpec(
            num_scalar_prefetch=0, grid=(bsz, nd),
            in_specs=[pl.BlockSpec((1, L, td), lambda bi, ci: (bi, 0, ci)),
                      pl.BlockSpec((K, td), lambda bi, ci: (0, ci)),
                      pl.BlockSpec((1, td), lambda bi, ci: (0, ci))],
            out_specs=pl.BlockSpec((1, L, td), lambda bi, ci: (bi, 0, ci)),
            scratch_shapes=[pltpu.VMEM((L + K - 1, td), jnp.float32)]),
        compiler_params=pltpu.CompilerParams(
            dimension_semantics=("parallel", "parallel")),
    )(x, w_t, b.reshape(1, din))


def _dt_bc_kernel(x_ref, wdt_ref, bdt_ref, wbc_ref, dt_ref, bc_ref):
    # dt = softplus(x @ (W_xproj_dt @ W_dtproj) + b_dt)  — rank folding done offline,
    # so the dt path is a single lane-dense (Din,Din) matmul instead of two tiny ones.
    x = x_ref[...]
    dt = jnp.dot(x, wdt_ref[...], preferred_element_type=jnp.float32) + bdt_ref[...]
    dt_ref[...] = jax.nn.softplus(dt).astype(dt_ref.dtype)
    bc_ref[...] = jnp.dot(x, wbc_ref[...],
                          preferred_element_type=jnp.float32).astype(bc_ref.dtype)


def dt_bc_proj(x2d, w_dt_full, b_dt, w_bc):
    m, di = x2d.shape
    s2 = w_bc.shape[1]
    tm = _row_tile(m)
    return pl.pallas_call(
        _dt_bc_kernel,
        out_shape=(jax.ShapeDtypeStruct((m, di), jnp.bfloat16),
                   jax.ShapeDtypeStruct((m, s2), jnp.bfloat16)),
        grid_spec=pltpu.PrefetchScalarGridSpec(
            num_scalar_prefetch=0, grid=(m // tm,),
            in_specs=[pl.BlockSpec((tm, di), lambda i: (i, 0)),
                      pl.BlockSpec((di, di), lambda i: (0, 0)),
                      pl.BlockSpec((1, di), lambda i: (0, 0)),
                      pl.BlockSpec((di, s2), lambda i: (0, 0))],
            out_specs=(pl.BlockSpec((tm, di), lambda i: (i, 0)),
                       pl.BlockSpec((tm, s2), lambda i: (i, 0)))),
        compiler_params=pltpu.CompilerParams(dimension_semantics=("parallel",)),
    )(x2d, w_dt_full, b_dt.reshape(1, di), w_bc)


def _make_scan_kernel(eps, d_state):
    S = d_state

    def kernel(u_ref, dt_ref, bct_ref, z_ref, At_ref, D_ref, nw_ref, wo_ref,
               o_ref, h_ref, dA_ref, hb_ref, yc_ref):
        # blocks: u/dt/z (1,T,Din); bct (1,1,2S,T) (B;C stacked, pre-transposed);
        # At (S,Din) f32; D/nw (1,Din) f32; wo (Din,d) bf16; out (1,T,d) bf16.
        # scratch: h (S,Din) f32 carried state; dA/hb (T,S,Din) f32; yc (T,Din) f32.
        T = u_ref.shape[1]

        @pl.when(pl.program_id(1) == 0)
        def _():
            h_ref[...] = jnp.zeros_like(h_ref)

        At = At_ref[...]                                                 # (S, Din)
        BcT = bct_ref[0, 0, pl.ds(0, S), :].astype(jnp.float32)          # (S, T)
        CcT = bct_ref[0, 0, pl.ds(S, S), :].astype(jnp.float32)          # (S, T)

        # phase 1: hoist exp(dt*A) and B*(dt*u) for the whole chunk — EUP/VPU work
        # now pipelines off the serial dependency chain.
        for t in range(T):
            dt_row = dt_ref[0, pl.ds(t, 1), :].astype(jnp.float32)       # (1, Din)
            u_row = u_ref[0, pl.ds(t, 1), :].astype(jnp.float32)         # (1, Din)
            dA_ref[t] = jnp.exp(dt_row * At)                             # (S, Din)
            hb_ref[t] = BcT[:, t:t + 1] * (dt_row * u_row)               # (S, Din)

        # phase 2: the only truly serial part — one multiply-add per step.
        h = h_ref[...]
        for t in range(T):
            h = dA_ref[t] * h + hb_ref[t]
            hb_ref[t] = h
        h_ref[...] = h

        # phase 3: y_t = C_t · h_t  (independent across t, sublane reduce).
        for t in range(T):
            yc_ref[pl.ds(t, 1), :] = jnp.sum(CcT[:, t:t + 1] * hb_ref[t],
                                             axis=0, keepdims=True)

        # phase 4 (dense epilogue): D skip, SiLU(z) gate, RMSNorm, fused out_proj.
        u_c = u_ref[0].astype(jnp.float32)
        z_c = z_ref[0].astype(jnp.float32)
        y = yc_ref[...] + D_ref[...] * u_c
        y = y * (z_c * jax.nn.sigmoid(z_c))
        ms = jnp.mean(y * y, axis=-1, keepdims=True)
        y = (y * lax.rsqrt(ms + eps) * nw_ref[...]).astype(wo_ref.dtype)
        o_ref[0] = jnp.dot(y, wo_ref[...],
                           preferred_element_type=jnp.float32).astype(o_ref.dtype)
    return kernel


def selective_scan_fused(u, dt, bc, z, A_t, Dp, norm_w, w_out, chunk, eps=1e-5):
    """h_t = exp(dt*A)*h_{t-1} + dt*B_t*u_t ; y_t = C_t.h_t + D*u_t, then fused
    SiLU(z) gate, RMSNorm and out_proj.  Grid = (batch, chunks); state in VMEM."""
    bsz, Lp, din = u.shape
    s2 = bc.shape[-1]
    d_state = s2 // 2
    d_model = w_out.shape[1]
    T = chunk
    nch = Lp // T
    # tiny per-chunk transpose of B;C in XLA so the kernel only does cheap static slices
    bct = bc.reshape(bsz, nch, T, s2).transpose(0, 1, 3, 2)              # (B,nch,2S,T)
    return pl.pallas_call(
        _make_scan_kernel(eps, d_state),
        out_shape=jax.ShapeDtypeStruct((bsz, Lp, d_model), jnp.bfloat16),
        grid_spec=pltpu.PrefetchScalarGridSpec(
            num_scalar_prefetch=0,
            grid=(bsz, nch),
            in_specs=[
                pl.BlockSpec((1, T, din), lambda b, c: (b, c, 0)),          # u
                pl.BlockSpec((1, T, din), lambda b, c: (b, c, 0)),          # dt
                pl.BlockSpec((1, 1, s2, T), lambda b, c: (b, c, 0, 0)),     # [B;C]^T
                pl.BlockSpec((1, T, din), lambda b, c: (b, c, 0)),          # z gate
                pl.BlockSpec((d_state, din), lambda b, c: (0, 0)),          # A^T
                pl.BlockSpec((1, din), lambda b, c: (0, 0)),                # D
                pl.BlockSpec((1, din), lambda b, c: (0, 0)),                # norm w
                pl.BlockSpec((din, d_model), lambda b, c: (0, 0)),          # W_out
            ],
            out_specs=pl.BlockSpec((1, T, d_model), lambda b, c: (b, c, 0)),
            scratch_shapes=[pltpu.VMEM((d_state, din), jnp.float32),
                            pltpu.VMEM((T, d_state, din), jnp.float32),
                            pltpu.VMEM((T, d_state, din), jnp.float32),
                            pltpu.VMEM((T, din), jnp.float32)],
        ),
        compiler_params=pltpu.CompilerParams(
            dimension_semantics=("parallel", "arbitrary")),
    )(u, dt, bct, z, A_t, Dp.reshape(1, din), norm_w.reshape(1, din), w_out)


def _make_layernorm_kernel(eps):
    def kernel(x_ref, w_ref, b_ref, o_ref):
        x = x_ref[...].astype(jnp.float32)
        mu = jnp.mean(x, axis=-1, keepdims=True)
        var = jnp.mean((x - mu) * (x - mu), axis=-1, keepdims=True)
        o_ref[...] = ((x - mu) * lax.rsqrt(var + eps) * w_ref[...]
                      + b_ref[...]).astype(o_ref.dtype)
    return kernel


def layernorm(x2d, w, b, eps=1e-5):
    m, d = x2d.shape
    tm = _row_tile(m, target=1024)               # pure elementwise: bigger row tiles
    return pl.pallas_call(
        _make_layernorm_kernel(eps),
        out_shape=jax.ShapeDtypeStruct((m, d), jnp.float32),
        grid_spec=pltpu.PrefetchScalarGridSpec(
            num_scalar_prefetch=0, grid=(m // tm,),
            in_specs=[pl.BlockSpec((tm, d), lambda i: (i, 0)),
                      pl.BlockSpec((1, d), lambda i: (0, 0)),
                      pl.BlockSpec((1, d), lambda i: (0, 0))],
            out_specs=pl.BlockSpec((tm, d), lambda i: (i, 0))),
        compiler_params=pltpu.CompilerParams(dimension_semantics=("parallel",)),
    )(x2d, w.reshape(1, d), b.reshape(1, d))


# ----------------------------------------------------------------------------
# JAX glue (layout plumbing / model structure)
# ----------------------------------------------------------------------------

def patch_embed(x_nchw, w_t, b, patch):
    """Conv2d(kernel=stride=patch) as a per-patch matmul in the Pallas linear kernel."""
    B, C, H, W = x_nchw.shape
    hp, wp = H // patch, W // patch
    xp = x_nchw.reshape(B, C, hp, patch, wp, patch)
    xp = xp.transpose(0, 2, 4, 1, 3, 5).reshape(B * hp * wp, C * patch * patch)
    y = linear(xp.astype(jnp.bfloat16), w_t, b)
    return y.reshape(B, hp * wp, w_t.shape[1]), (hp, wp)


def block_forward(p, hidden, residual, layer_idx, token_size):
    """Block: Add -> RMSNorm -> (rotate on odd layers) -> Mamba mixer -> (unrotate)."""
    bsz, M, d = hidden.shape
    mp = p["mixer"]
    d_inner = mp["D"].shape[0]

    # fused: residual add + RMSNorm + in_proj (x / z heads emitted separately)
    res, x_in, z = add_norm_inproj(hidden.reshape(bsz * M, d),
                                   residual.reshape(bsz * M, d),
                                   p["norm_w"], mp["in_proj_wx"], mp["in_proj_wz"])
    residual = res.reshape(bsz, M, d)
    x_in = x_in.reshape(bsz, M, d_inner)
    z = z.reshape(bsz, M, d_inner)

    rotate = (layer_idx % 2 != 0)                # rotate_every_block=True
    if rotate:                                   # per-token in_proj commutes with rotate
        x_in = _rot(x_in, token_size)
        z = _rot(z, token_size)

    xc = conv_silu(x_in, mp["conv_wt"], mp["conv_b"])

    T, Lp = _scan_chunk(M)
    if Lp != M:                                  # pad so the scan never unrolls L fully
        xc = jnp.pad(xc, ((0, 0), (0, Lp - M), (0, 0)))
        z = jnp.pad(z, ((0, 0), (0, Lp - M), (0, 0)))

    dt, bc = dt_bc_proj(xc.reshape(bsz * Lp, d_inner), mp["dt_full_wt"],
                        mp["dt_proj_b"], mp["bc_proj_wt"])
    dt = dt.reshape(bsz, Lp, d_inner)
    bc = bc.reshape(bsz, Lp, -1)

    out = selective_scan_fused(xc, dt, bc, z, mp["A_t"], mp["D"],
                               mp["ssm_norm_w"], mp["out_proj_wt"], chunk=T)
    if Lp != M:
        out = out[:, :M, :]
    if rotate:
        out = _unrot(out, token_size)
    return out, residual


def mm_fastvim_forward(params, x_nchw):
    cfg = params["cfg"]
    d = cfg["embed_dim"]
    bsz = x_nchw.shape[0]

    tokens, (hp, wp) = patch_embed(x_nchw, params["patch_wt"], params["patch_b"],
                                   cfg["patch_size"])
    tokens = (tokens + params["pos_embed"]).astype(jnp.bfloat16)   # if_abs_pos_embed
    M = hp * wp

    hidden = tokens
    residual = jnp.zeros((bsz, M, d), jnp.float32)   # first block: residual = hidden
    feats = []
    for i, lp in enumerate(params["layers"]):
        hidden, residual = block_forward(lp, hidden, residual, i, cfg["token_size"])
        if i in cfg["out_indices"]:
            feats.append(hidden)                     # mixer output, as in the reference

    outs = []
    for j, o in enumerate(feats):
        onp = params["outnorms"][j]
        o2 = layernorm(o.reshape(bsz * M, d), onp["w"], onp["b"], eps=1e-5)
        outs.append(o2.reshape(bsz, hp, wp, d).transpose(0, 3, 1, 2))  # -> NCHW
    return outs[0] if len(outs) == 1 else outs


def init_params(key, *, img_size=16, patch_size=4, in_chans=3, embed_dim=32,
                depth=4, out_indices=(1, 3), d_state=16, d_conv=4, expand=2):
    d_inner = expand * embed_dim
    dt_rank = math.ceil(embed_dim / 16)
    hp = wp = img_size // patch_size
    num_patches = hp * wp

    def nrm(k, shape, std=0.02):
        return jax.random.normal(k, shape, dtype=jnp.float32) * std

    keys = iter(jax.random.split(key, 4 + depth * 10))
    params = {
        "cfg": dict(patch_size=patch_size, embed_dim=embed_dim,
                    token_size=(hp, wp), out_indices=tuple(out_indices)),
        # Conv2d(patch, stride=patch) weight pre-flattened/transposed to (C*p*p, D)
        "patch_wt": nrm(next(keys), (in_chans * patch_size * patch_size,
                                     embed_dim)).astype(jnp.bfloat16),
        "patch_b": jnp.zeros((embed_dim,), jnp.float32),
        "pos_embed": nrm(next(keys), (1, num_patches, embed_dim)).astype(jnp.bfloat16),
        "layers": [],
        "outnorms": [],
    }
    for _ in range(depth):
        w_x_dt = nrm(next(keys), (d_inner, dt_rank))
        w_dtp = nrm(next(keys), (dt_rank, d_inner), std=0.1)
        params["layers"].append({
            "norm_w": jnp.ones((embed_dim,), jnp.float32),
            "mixer": {
                # all Linear weights stored pre-transposed as (in_features, out_features)
                "in_proj_wx": nrm(next(keys), (embed_dim, d_inner)).astype(jnp.bfloat16),
                "in_proj_wz": nrm(next(keys), (embed_dim, d_inner)).astype(jnp.bfloat16),
                "conv_wt": nrm(next(keys), (d_conv, d_inner),
                               std=0.1).astype(jnp.bfloat16),      # taps on sublanes
                "conv_b": jnp.zeros((d_inner,), jnp.float32),
                # dt_proj ∘ x_proj_dt folded offline into a single lane-dense weight
                "dt_full_wt": (w_x_dt @ w_dtp).astype(jnp.bfloat16),
                "dt_proj_b": jnp.log(jnp.expm1(
                    jnp.full((d_inner,), 0.01, jnp.float32))),
                "bc_proj_wt": nrm(next(keys),
                                  (d_inner, 2 * d_state)).astype(jnp.bfloat16),
                "A_t": -jnp.broadcast_to(
                    jnp.arange(1, d_state + 1, dtype=jnp.float32)[:, None],
                    (d_state, d_inner)),
                "D": jnp.ones((d_inner,), jnp.float32),
                "ssm_norm_w": jnp.ones((d_inner,), jnp.float32),
                "out_proj_wt": nrm(next(keys), (d_inner, embed_dim)).astype(jnp.bfloat16),
            },
        })
    for _ in out_indices:
        params["outnorms"].append({
            "w": jnp.ones((embed_dim,), jnp.float32),
            "b": jnp.zeros((embed_dim,), jnp.float32),
        })
    return params


if __name__ == "__main__":
    key = jax.random.PRNGKey(0)
    pkey, xkey = jax.random.split(key)
    params = init_params(pkey)
    x = jax.random.normal(xkey, (2, 3, 16, 16), dtype=jnp.float32)  # NCHW like PyTorch
    outs = mm_fastvim_forward(params, x)
    outs = jax.block_until_ready(outs)
    assert all(o.shape == (2, 32, 4, 4) for o in outs)
    assert all(bool(jnp.all(jnp.isfinite(o.astype(jnp.float32)))) for o in outs)
    print("KERNEL_OK")
</pallas_src>

<mosaic_0001>
module attributes {stable_mosaic.version = 11 : i64} {
  func.func @_linear_bias_kernel(%arg0: i32, %arg1: memref<32x48xbf16, #tpu.memory_space<vmem>>, %arg2: memref<48x32xbf16, #tpu.memory_space<vmem>>, %arg3: memref<1x32xf32, #tpu.memory_space<vmem>>, %arg4: memref<32x32xbf16, #tpu.memory_space<vmem>>) attributes {dimension_semantics = [#tpu.dimension_semantics<parallel>], iteration_bounds = array<i64: 1>, scalar_prefetch = 0 : i64, scratch_operands = 0 : i64, tpu.core_type = #tpu.core_type<tc>, window_params = [{transform_indices = @transform_0, window_bounds = array<i64: 32, 48>}, {pipeline_mode = #tpu.pipeline_mode<synchronous>, transform_indices = @transform_1, window_bounds = array<i64: 48, 32>}, {pipeline_mode = #tpu.pipeline_mode<synchronous>, transform_indices = @transform_2, window_bounds = array<i64: 1, 32>}, {transform_indices = @transform_3, window_bounds = array<i64: 32, 32>}]} {
    %c0 = arith.constant 0 : index
    %c0_0 = arith.constant 0 : index
    %0 = vector.load %arg1[%c0, %c0_0] : memref<32x48xbf16, #tpu.memory_space<vmem>>, vector<32x48xbf16>
    %c0_1 = arith.constant 0 : index
    %c0_2 = arith.constant 0 : index
    %1 = vector.load %arg2[%c0_1, %c0_2] : memref<48x32xbf16, #tpu.memory_space<vmem>>, vector<48x32xbf16>
    %cst = arith.constant dense<0.000000e+00> : vector<32x32xf32>
    %2 = tpu.matmul %0, %1, %cst {dimension_numbers = #tpu.dot_dimension_numbers<[1], [0], [0], [1], [0, 0, 1, 1], [], []>} : vector<32x48xbf16>, vector<48x32xbf16>, vector<32x32xf32> -> vector<32x32xf32>
    %c0_3 = arith.constant 0 : index
    %c0_4 = arith.constant 0 : index
    %3 = vector.load %arg3[%c0_3, %c0_4] : memref<1x32xf32, #tpu.memory_space<vmem>>, vector<1x32xf32>
    %4 = vector.broadcast %3 : vector<1x32xf32> to vector<32x32xf32>
    %5 = arith.addf %2, %4 : vector<32x32xf32>
    %6 = arith.truncf %5 : vector<32x32xf32> to vector<32x32xbf16>
    %c0_5 = arith.constant 0 : index
    %c0_6 = arith.constant 0 : index
    %7 = vector.load %arg4[%c0_5, %c0_6] : memref<32x32xbf16, #tpu.memory_space<vmem>>, vector<32x32xbf16>
    tpu.vector_store %arg4[%c0_5, %c0_6], %6 {strides = array<i32>} : memref<32x32xbf16, #tpu.memory_space<vmem>>, vector<32x32xbf16>,
    return
  }
  func.func @transform_0(%arg0: i32) -> (i32, i32) {
    %c0_i32 = arith.constant 0 : i32
    %c0_i32_0 = arith.constant 0 : i32
    return %arg0, %c0_i32 : i32, i32
  }
  func.func @transform_1(%arg0: i32) -> (i32, i32) {
    %c0_i32 = arith.constant 0 : i32
    %c0_i32_0 = arith.constant 0 : i32
    %c0_i32_1 = arith.constant 0 : i32
    return %c0_i32, %c0_i32_0 : i32, i32
  }
  func.func @transform_2(%arg0: i32) -> (i32, i32) {
    %c0_i32 = arith.constant 0 : i32
    %c0_i32_0 = arith.constant 0 : i32
    %c0_i32_1 = arith.constant 0 : i32
    return %c0_i32, %c0_i32_0 : i32, i32
  }
  func.func @transform_3(%arg0: i32) -> (i32, i32) {
    %c0_i32 = arith.constant 0 : i32
    %c0_i32_0 = arith.constant 0 : i32
    return %arg0, %c0_i32 : i32, i32
  }
}

</mosaic_0001>

<llo_original>
// kernel: tpu_custom_call.1
$region0: #{tpu_custom_call.1}
  #allocation0 [shape = 'u32[]', space=smem, size = 0x4, offset = 0x4, fixed_abs, tag = 'smem constant byte address 0x4 - core index']
  #allocation1 [shape = 'u32[72,128]{1,0:T(1,128)}', space=vmem, size = 0x9000, scoped, tag = 'internal scratch']
  %s0 = inlined_call_operand.vmem [shape: bf16[32,48], index: 0, kind: input, shape index: {}]
  %s1 = inlined_call_operand.vmem [shape: bf16[48,32], index: 1, kind: input, shape index: {}]
  %s2 = inlined_call_operand.vmem [shape: f32[1,32], index: 2, kind: input, shape index: {}]
  %s3 = inlined_call_operand.hbm [shape: bf16[32,32], index: 3, kind: output, shape index: {}]
  %s4 = sld [smem:[#allocation0]]
  $region22: #{tpu_custom_call.1} parent=0
    _
  %s6 = ssub.s32 1, %s4
  %s7 = scalar_select 0, %s6, %s4
  $region1: #{tpu_custom_call.1} parent=0
    #allocation2 [shape = 'u8[8192]{0}', space=vmem, size = 0x2000, scoped, tag = 'output window, operand 0, single buffered']
    #allocation3 [shape = 's32[1]{0}', space=sflag, size = 0x4, scoped, tag = 'scoped memory for tpu_custom_call.1']
    %8 = vsyncpa [#allocation3], 0
    // Predicated region
    $region2: #{tpu_custom_call.1} parent=1 // pred_check
      _
    $region3: #{tpu_custom_call.1} parent=1 // pred_check_branch
      %10 = sbr.rel (0) target = $region5
    $region4: #{tpu_custom_call.1} parent=1 // pred_region
      _
    $region5: #{tpu_custom_call.1} parent=1 // pred_fallthru
      _
    // Predicated region
    $region6: #{tpu_custom_call.1} parent=1 // pred_check
      _
    $region7: #{tpu_custom_call.1} parent=1 // pred_check_branch
      %12 = sbr.rel (0) target = $region9
    $region8: #{tpu_custom_call.1} parent=1 // pred_region
      _
    $region9: #{tpu_custom_call.1} parent=1 // pred_fallthru
      _
    // Predicated region
    $region10: #{tpu_custom_call.1} parent=1 // pred_check
      _
    $region11: #{tpu_custom_call.1} parent=1 // pred_check_branch
      %14 = sbr.rel (0) target = $region13
    $region12: #{tpu_custom_call.1} parent=1 // pred_region
      _
    $region13: #{tpu_custom_call.1} parent=1 // pred_fallthru
      _
    %v16 = vld [vmem:[%s0] sm:$0xf]
    %v17 = vld [vmem:[%s0 + $0x4] sm:$0xf]
    %v18 = vld [vmem:[%s0 + $0x8] sm:$0xf]
    %v19 = vld [vmem:[%s0 + $0xc] sm:$0xf]
    %v20 = vld [vmem:[%s1] sm:$0xf]
    %v21 = vld [vmem:[%s1 + $0x4] sm:$0xf]
    %v22 = vld [vmem:[%s1 + $0x8] sm:$0xf]
    %v23 = vld [vmem:[%s1 + $0xc] sm:$0xf]
    %v24 = vld [vmem:[%s1 + $0x10] sm:$0xf]
    %v25 = vld [vmem:[%s1 + $0x14] sm:$0xf]
    %v26 = vld [vmem:[%s2] sm:$0x1]
    %v28 = vperm.slane %v26, 0
    %v34 = vunpack.c.l.b16 %v16
    %v35 = vunpack.c.l.b16 %v17
    %v36 = vunpack.c.l.b16 %v18
    %v37 = vunpack.c.l.b16 %v19
    %v38 = vpack.c.b16 %v35, %v34
    %v39 = vpack.c.b16 %v37, %v36
    %v46 = vunpack.c.l.b16 %v20
    %v47 = vunpack.c.l.b16 %v21
    %v48 = vunpack.c.l.b16 %v22
    %v49 = vunpack.c.l.b16 %v23
    %v50 = vunpack.c.l.b16 %v24
    %v51 = vunpack.c.l.b16 %v25
    %v52 = vpack.c.b16 %v47, %v46
    %v53 = vpack.c.b16 %v49, %v48
    %v54 = vpack.c.b16 %v51, %v50
    %vm58 = vcmask 392192
    %v60 = vsel %vm58, %v38, 0
    %v63 = vsel %vm58, %v39, 0
    %65 = vmatpush.bf16.msra.mxu0 0
    %66 = vmatpush.bf16.msra.mxu0 0
    %67 = vmatpush.bf16.msra.mxu0 0
    %68 = vmatpush.bf16.msra.mxu0 0
    %69 = vmatpush.bf16.msra.mxu0 0
    %70 = vmatpush.bf16.msra.mxu0 %v54
    %71 = vmatpush.bf16.msra.mxu0 %v53
    %72 = vmatpush.bf16.msra.mxu0 %v52
    %73 = vmatmul.bf16.gmra.mxu0 %v60
    %v74 = vpop.f32.mrf.mxu0
    %v75 = vadd.f32 %v28, %v74
    %v76 = vpop.f32.mrf.mxu0
    %v77 = vadd.f32 %v28, %v76
    %78 = vmatmul.bf16.gmra.mxu0 %v63
    %v79 = vpop.f32.mrf.mxu0
    %v80 = vadd.f32 %v28, %v79
    %v81 = vpop.f32.mrf.mxu0
    %v82 = vadd.f32 %v28, %v81
    %83 = vdwg.mxu0
    %v84 = vpack.c.bf16 %v75, %v75
    %v85 = vpack.c.bf16 %v77, %v77
    %v86 = vpack.c.bf16 %v80, %v80
    %v87 = vpack.c.bf16 %v82, %v82
    %vm88 = vcmask 257024
    %89 = vst.msk [vmem:[#allocation2] sm:$0xf] %vm88, %v84
    %90 = vst.msk [vmem:[#allocation2 + $0x4] sm:$0xf] %vm88, %v85
    %91 = vst.msk [vmem:[#allocation2 + $0x8] sm:$0xf] %vm88, %v86
    %92 = vst.msk [vmem:[#allocation2 + $0xc] sm:$0xf] %vm88, %v87
    // Predicated region
    $region14: #{tpu_custom_call.1} parent=1 // pred_check
      _
    $region15: #{tpu_custom_call.1} parent=1 // pred_check_branch
      %94 = sbr.rel (0) target = $region17
    $region16: #{tpu_custom_call.1} parent=1 // pred_region
      %96 = vsyncadd [#allocation3], 0
      %s97 = sshll.u32 [#allocation2], 4
      %s98 = int_to_ptr.vmem [resolvable:$true] %s97
      %s99 = sshll.u32 %s3, 4
      %s100 = int_to_ptr.hbm [resolvable:$true] %s99
      %105 = dma.vmem_to_hbm [thread:$0]  %s98, 256, %s100, [#allocation3], 64, 64, 4
    $region17: #{tpu_custom_call.1} parent=1 // pred_fallthru
      _
    // Predicated region
    $region18: #{tpu_custom_call.1} parent=1 // pred_check
      _
    $region19: #{tpu_custom_call.1} parent=1 // pred_check_branch
      %107 = sbr.rel (0) target = $region21
    $region20: #{tpu_custom_call.1} parent=1 // pred_region
      %109 = dma.done [#allocation3], 256
    $region21: #{tpu_custom_call.1} parent=1 // pred_fallthru
      _
    %110 = vsyncpa [#allocation3], 1

</llo_original>
